<compile_context>
chip_gen: v7x
topology: tpu7x:2x2x1
jax: 0.10.0
libtpu: 0.0.40
codegen_flags: <defaults>
</compile_context>

<pallas_src>
import functools

import jax
import jax.numpy as jnp
from jax.experimental import pallas as pl
from jax.experimental.pallas import tpu as pltpu

BN_EPS = 1e-5
LANE = 128


def _round_up(n, m):
    return ((n + m - 1) // m) * m


# ----------------------------------------------------------------------------
# Fused Pallas kernel: Linear -> BatchNorm1d(batch stats) -> ReLU -> concat
# ----------------------------------------------------------------------------
def _residual_kernel(x_ref, w_ref, b_ref, gamma_ref, beta_ref, o_ref, *, dout_p):
    x = x_ref[...]                                              # (B, Din_p) f32
    h = jnp.dot(x, w_ref[...], preferred_element_type=jnp.float32) + b_ref[...]

    # BatchNorm1d with batch statistics (training-mode semantics, biased var).
    # One pass: reuse `centered` for both the variance and the normalization.
    mean = jnp.mean(h, axis=0, keepdims=True)                   # (1, Dout_p)
    centered = h - mean
    var = jnp.mean(centered * centered, axis=0, keepdims=True)
    scale = jax.lax.rsqrt(var + BN_EPS) * gamma_ref[...]        # EUP rsqrt, (1, Dout_p)

    # In-kernel residual concat. dout_p is a multiple of 128, so both stores
    # are lane-aligned, unmasked, lane-dense.
    o_ref[:, :dout_p] = jnp.maximum(centered * scale + beta_ref[...], 0.0)
    o_ref[:, dout_p:] = x


# ----------------------------------------------------------------------------
# Wrapper
# ----------------------------------------------------------------------------
def residual_forward(x, w, b, gamma, beta):
    """Pallas forward of the `Residual` module.

    x:              (B, Din) activations
    w:              (Din, Dout)  -- transposed PyTorch Linear weight layout
    b, gamma, beta: (Dout,) or (1, Dout)
    returns         (B, Dout + Din) = concat([ReLU(BN(x @ w + b)), x], axis=1)
    """
    x = jnp.asarray(x, jnp.float32)
    B, din = x.shape
    dout = w.shape[1]
    w = jnp.asarray(w, jnp.float32)
    b = jnp.reshape(jnp.asarray(b, jnp.float32), (1, dout))
    gamma = jnp.reshape(jnp.asarray(gamma, jnp.float32), (1, dout))
    beta = jnp.reshape(jnp.asarray(beta, jnp.float32), (1, dout))

    # Zero-pad feature dims to multiples of 128 so every store inside the
    # kernel is lane-dense and the concat offset is lane-aligned.  Padded
    # columns of h are identically 0 (zero weights + zero bias) and get
    # sliced away below; batch axis is never padded, so BN stats stay exact.
    din_p = _round_up(din, LANE)
    dout_p = _round_up(dout, LANE)
    x_p = jnp.pad(x, ((0, 0), (0, din_p - din)))
    w_p = jnp.pad(w, ((0, din_p - din), (0, dout_p - dout)))
    b_p = jnp.pad(b, ((0, 0), (0, dout_p - dout)))
    gamma_p = jnp.pad(gamma, ((0, 0), (0, dout_p - dout)))
    beta_p = jnp.pad(beta, ((0, 0), (0, dout_p - dout)))

    vmem = pl.BlockSpec(memory_space=pltpu.VMEM)
    out_p = pl.pallas_call(
        functools.partial(_residual_kernel, dout_p=dout_p),
        out_shape=jax.ShapeDtypeStruct((B, dout_p + din_p), jnp.float32),
        in_specs=[vmem] * 5,
        out_specs=vmem,
    )(x_p, w_p, b_p, gamma_p, beta_p)

    if din_p == din and dout_p == dout:
        return out_p  # fast path: kernel output is the final result, zero glue
    # Slow path (non-128-multiple feature dims): drop the padded columns.
    return jnp.concatenate([out_p[:, :dout], out_p[:, dout_p:dout_p + din]],
                           axis=1)


# ----------------------------------------------------------------------------
# Pure-JAX reference (PyTorch training-mode BatchNorm1d semantics)
# ----------------------------------------------------------------------------
def residual_forward_ref(x, w, b, gamma, beta):
    h = x @ w + jnp.reshape(b, (1, -1))
    mean = jnp.mean(h, axis=0, keepdims=True)
    var = jnp.mean((h - mean) ** 2, axis=0, keepdims=True)   # biased variance
    h = (h - mean) / jnp.sqrt(var + BN_EPS)
    h = h * jnp.reshape(gamma, (1, -1)) + jnp.reshape(beta, (1, -1))
    h = jnp.maximum(h, 0.0)
    return jnp.concatenate([h, x], axis=1)


if __name__ == "__main__":
    # Lane-aligned demo shapes -> fast path (no padding, no XLA glue).
    batch, i_dim, o_dim = 8, 128, 128

    key = jax.random.PRNGKey(0)
    kx, kw, kb = jax.random.split(key, 3)
    bound = 1.0 / (i_dim ** 0.5)
    x = jax.random.normal(kx, (batch, i_dim), jnp.float32)
    w = jax.random.uniform(kw, (i_dim, o_dim), jnp.float32, -bound, bound)
    b = jax.random.uniform(kb, (o_dim,), jnp.float32, -bound, bound)
    gamma = jnp.ones((o_dim,), jnp.float32)    # BatchNorm1d weight init
    beta = jnp.zeros((o_dim,), jnp.float32)    # BatchNorm1d bias init

    out = jax.block_until_ready(residual_forward(x, w, b, gamma, beta))
    ref = residual_forward_ref(x, w, b, gamma, beta)
    assert out.shape == (batch, o_dim + i_dim), out.shape
    assert jnp.allclose(out, ref, atol=1e-4, rtol=1e-4), "mismatch vs reference"

    # Also exercise the non-lane-aligned fallback path (CTGAN-like i=o=32).
    i2, o2 = 32, 32
    b2 = 1.0 / (i2 ** 0.5)
    x2 = jax.random.normal(kx, (batch, i2), jnp.float32)
    w2 = jax.random.uniform(kw, (i2, o2), jnp.float32, -b2, b2)
    bias2 = jax.random.uniform(kb, (o2,), jnp.float32, -b2, b2)
    g2 = jnp.ones((o2,), jnp.float32)
    be2 = jnp.zeros((o2,), jnp.float32)
    out2 = jax.block_until_ready(residual_forward(x2, w2, bias2, g2, be2))
    ref2 = residual_forward_ref(x2, w2, bias2, g2, be2)
    assert out2.shape == (batch, o2 + i2), out2.shape
    assert jnp.allclose(out2, ref2, atol=1e-4, rtol=1e-4), "mismatch (fallback)"

    print("KERNEL_OK")
</pallas_src>

<mosaic_0001>
module attributes {stable_mosaic.version = 11 : i64} {
  func.func @_residual_kernel(%arg0: memref<8x128xf32, #tpu.memory_space<vmem>>, %arg1: memref<128x128xf32, #tpu.memory_space<vmem>>, %arg2: memref<1x128xf32, #tpu.memory_space<vmem>>, %arg3: memref<1x128xf32, #tpu.memory_space<vmem>>, %arg4: memref<1x128xf32, #tpu.memory_space<vmem>>, %arg5: memref<8x256xf32, #tpu.memory_space<vmem>>) attributes {dimension_semantics = [], scalar_prefetch = 0 : i64, scratch_operands = 0 : i64, tpu.core_type = #tpu.core_type<tc>} {
    %c0 = arith.constant 0 : index
    %c0_0 = arith.constant 0 : index
    %0 = vector.load %arg0[%c0, %c0_0] : memref<8x128xf32, #tpu.memory_space<vmem>>, vector<8x128xf32>
    %c0_1 = arith.constant 0 : index
    %c0_2 = arith.constant 0 : index
    %1 = vector.load %arg1[%c0_1, %c0_2] : memref<128x128xf32, #tpu.memory_space<vmem>>, vector<128x128xf32>
    %cst = arith.constant dense<0.000000e+00> : vector<8x128xf32>
    %2 = tpu.matmul %0, %1, %cst {dimension_numbers = #tpu.dot_dimension_numbers<[1], [0], [0], [1], [0, 0, 1, 1], [], []>} : vector<8x128xf32>, vector<128x128xf32>, vector<8x128xf32> -> vector<8x128xf32>
    %c0_3 = arith.constant 0 : index
    %c0_4 = arith.constant 0 : index
    %3 = vector.load %arg2[%c0_3, %c0_4] : memref<1x128xf32, #tpu.memory_space<vmem>>, vector<1x128xf32>
    %4 = vector.broadcast %3 : vector<1x128xf32> to vector<8x128xf32>
    %5 = arith.addf %2, %4 : vector<8x128xf32>
    %cst_5 = arith.constant dense<0.000000e+00> : vector<128xf32>
    %6 = vector.multi_reduction <add>, %5, %cst_5 [0] : vector<8x128xf32> to vector<128xf32>
    %7 = vector.shape_cast %6 : vector<128xf32> to vector<1x128xf32>
    %cst_6 = arith.constant 8.000000e+00 : f32
    %8 = vector.broadcast %cst_6 : f32 to vector<1x128xf32>
    %9 = arith.divf %7, %8 : vector<1x128xf32>
    %10 = vector.broadcast %9 : vector<1x128xf32> to vector<8x128xf32>
    %11 = arith.subf %5, %10 : vector<8x128xf32>
    %12 = arith.mulf %11, %11 : vector<8x128xf32>
    %cst_7 = arith.constant dense<0.000000e+00> : vector<128xf32>
    %13 = vector.multi_reduction <add>, %12, %cst_7 [0] : vector<8x128xf32> to vector<128xf32>
    %14 = vector.shape_cast %13 : vector<128xf32> to vector<1x128xf32>
    %cst_8 = arith.constant 8.000000e+00 : f32
    %15 = vector.broadcast %cst_8 : f32 to vector<1x128xf32>
    %16 = arith.divf %14, %15 : vector<1x128xf32>
    %cst_9 = arith.constant 9.99999974E-6 : f32
    %17 = vector.broadcast %cst_9 : f32 to vector<1x128xf32>
    %18 = arith.addf %16, %17 : vector<1x128xf32>
    %19 = math.rsqrt %18 : vector<1x128xf32>
    %c0_10 = arith.constant 0 : index
    %c0_11 = arith.constant 0 : index
    %20 = vector.load %arg3[%c0_10, %c0_11] : memref<1x128xf32, #tpu.memory_space<vmem>>, vector<1x128xf32>
    %21 = arith.mulf %19, %20 : vector<1x128xf32>
    %22 = vector.broadcast %21 : vector<1x128xf32> to vector<8x128xf32>
    %23 = arith.mulf %11, %22 : vector<8x128xf32>
    %c0_12 = arith.constant 0 : index
    %c0_13 = arith.constant 0 : index
    %24 = vector.load %arg4[%c0_12, %c0_13] : memref<1x128xf32, #tpu.memory_space<vmem>>, vector<1x128xf32>
    %25 = vector.broadcast %24 : vector<1x128xf32> to vector<8x128xf32>
    %26 = arith.addf %23, %25 : vector<8x128xf32>
    %cst_14 = arith.constant 0.000000e+00 : f32
    %27 = vector.broadcast %cst_14 : f32 to vector<8x128xf32>
    %28 = arith.maximumf %26, %27 : vector<8x128xf32>
    %c0_15 = arith.constant 0 : index
    %c0_16 = arith.constant 0 : index
    %29 = vector.load %arg5[%c0_15, %c0_16] : memref<8x256xf32, #tpu.memory_space<vmem>>, vector<8x128xf32>
    tpu.vector_store %arg5[%c0_15, %c0_16], %28 {strides = array<i32>} : memref<8x256xf32, #tpu.memory_space<vmem>>, vector<8x128xf32>,
    %c0_17 = arith.constant 0 : index
    %c128 = arith.constant 128 : index
    %30 = vector.load %arg5[%c0_17, %c128] : memref<8x256xf32, #tpu.memory_space<vmem>>, vector<8x128xf32>
    tpu.vector_store %arg5[%c0_17, %c128], %0 {strides = array<i32>} : memref<8x256xf32, #tpu.memory_space<vmem>>, vector<8x128xf32>,
    return
  }
}

</mosaic_0001>

<llo_original>
// kernel: tpu_custom_call.1
$region0: #{tpu_custom_call.1}
  #allocation0 [shape = 'u32[]', space=smem, size = 0x4, offset = 0x4, fixed_abs, tag = 'smem constant byte address 0x4 - core index']
  #allocation1 [shape = 'u32[144,128]{1,0:T(1,128)}', space=vmem, size = 0x12000, scoped, tag = 'internal scratch']
  %s0 = inlined_call_operand.hbm [shape: f32[8,128], index: 0, kind: input, shape index: {}]
  %s1 = inlined_call_operand.hbm [shape: f32[128,128], index: 1, kind: input, shape index: {}]
  %s2 = inlined_call_operand.vmem [shape: f32[1,128], index: 2, kind: input, shape index: {}]
  %s3 = inlined_call_operand.vmem [shape: f32[1,128], index: 3, kind: input, shape index: {}]
  %s4 = inlined_call_operand.vmem [shape: f32[1,128], index: 4, kind: input, shape index: {}]
  %s5 = inlined_call_operand.hbm [shape: f32[8,256], index: 5, kind: output, shape index: {}]
  %s6 = sld [smem:[#allocation0]]
  $region38: #{tpu_custom_call.1} parent=0
    _
  %s8 = ssub.s32 1, %s6
  %s9 = scalar_select 0, %s8, %s6
  $region1: #{tpu_custom_call.1} parent=0
    #allocation2 [shape = 'u8[4096]{0}', space=vmem, size = 0x1000, scoped, tag = 'input window, operand 0, single buffered']
    #allocation3 [shape = 's32[1]{0}', space=sflag, size = 0x4, scoped, tag = 'scoped memory for tpu_custom_call.1']
    #allocation4 [shape = 's32[1]{0}', space=sflag, size = 0x4, scoped, tag = 'scoped memory for tpu_custom_call.1']
    #allocation5 [shape = 'u8[65536]{0}', space=vmem, size = 0x10000, scoped, tag = 'input window, operand 1, single buffered']
    #allocation6 [shape = 's32[1]{0}', space=sflag, size = 0x4, scoped, tag = 'scoped memory for tpu_custom_call.1']
    #allocation7 [shape = 'u8[8192]{0}', space=vmem, size = 0x2000, scoped, tag = 'output window, operand 0, single buffered']
    %10 = vsyncpa [#allocation3], 0
    %11 = vsyncpa [#allocation6], 0
    %12 = vsyncpa [#allocation4], 0
    // Predicated region
    $region2: #{tpu_custom_call.1} parent=1 // pred_check
      _
    $region3: #{tpu_custom_call.1} parent=1 // pred_check_branch
      %14 = sbr.rel (0) target = $region5
    $region4: #{tpu_custom_call.1} parent=1 // pred_region
      %s16 = ssub.s32 128, 128
      %17 = vsyncadd [#allocation3], %s16
      %s19 = sshll.u32 [#allocation2], 4
      %s20 = int_to_ptr.vmem [resolvable:$true] %s19
      %22 = dma.hbm_to_vmem [thread:$0]  %s0, 128, %s20, [#allocation3]
    $region5: #{tpu_custom_call.1} parent=1 // pred_fallthru
      _
    // Predicated region
    $region6: #{tpu_custom_call.1} parent=1 // pred_check
      _
    $region7: #{tpu_custom_call.1} parent=1 // pred_check_branch
      %24 = sbr.rel (0) target = $region9
    $region8: #{tpu_custom_call.1} parent=1 // pred_region
      %s26 = ssub.s32 2048, 2048
      %27 = vsyncadd [#allocation6], %s26
      %s28 = sshll.u32 [#allocation5], 4
      %s29 = int_to_ptr.vmem [resolvable:$true] %s28
      %34 = dma.hbm_to_vmem [thread:$0]  %s1, 2048, %s29, [#allocation6], 128, 128, 8
    $region9: #{tpu_custom_call.1} parent=1 // pred_fallthru
      _
    // Predicated region
    $region10: #{tpu_custom_call.1} parent=1 // pred_check
      _
    $region11: #{tpu_custom_call.1} parent=1 // pred_check_branch
      %36 = sbr.rel (0) target = $region13
    $region12: #{tpu_custom_call.1} parent=1 // pred_region
      _
    $region13: #{tpu_custom_call.1} parent=1 // pred_fallthru
      _
    // Predicated region
    $region14: #{tpu_custom_call.1} parent=1 // pred_check
      _
    $region15: #{tpu_custom_call.1} parent=1 // pred_check_branch
      %38 = sbr.rel (0) target = $region17
    $region16: #{tpu_custom_call.1} parent=1 // pred_region
      _
    $region17: #{tpu_custom_call.1} parent=1 // pred_fallthru
      _
    // Predicated region
    $region18: #{tpu_custom_call.1} parent=1 // pred_check
      _
    $region19: #{tpu_custom_call.1} parent=1 // pred_check_branch
      %40 = sbr.rel (0) target = $region21
    $region20: #{tpu_custom_call.1} parent=1 // pred_region
      _
    $region21: #{tpu_custom_call.1} parent=1 // pred_fallthru
      _
    // Predicated region
    $region22: #{tpu_custom_call.1} parent=1 // pred_check
      _
    $region23: #{tpu_custom_call.1} parent=1 // pred_check_branch
      %42 = sbr.rel (0) target = $region25
    $region24: #{tpu_custom_call.1} parent=1 // pred_region
      %43 = dma.done [#allocation3], 128
    $region25: #{tpu_custom_call.1} parent=1 // pred_fallthru
      _
    // Predicated region
    $region26: #{tpu_custom_call.1} parent=1 // pred_check
      _
    $region27: #{tpu_custom_call.1} parent=1 // pred_check_branch
      %45 = sbr.rel (0) target = $region29
    $region28: #{tpu_custom_call.1} parent=1 // pred_region
      %46 = dma.done [#allocation6], 2048
    $region29: #{tpu_custom_call.1} parent=1 // pred_fallthru
      _
    %v47 = vld [vmem:[#allocation2] sm:$0xff]
    %v48 = vld [vmem:[#allocation5] sm:$0xff]
    %v49 = vld [vmem:[#allocation5 + $0x8] sm:$0xff]
    %v50 = vld [vmem:[#allocation5 + $0x10] sm:$0xff]
    %v51 = vld [vmem:[#allocation5 + $0x18] sm:$0xff]
    %v52 = vld [vmem:[#allocation5 + $0x20] sm:$0xff]
    %v53 = vld [vmem:[#allocation5 + $0x28] sm:$0xff]
    %v54 = vld [vmem:[#allocation5 + $0x30] sm:$0xff]
    %v55 = vld [vmem:[#allocation5 + $0x38] sm:$0xff]
    %v56 = vld [vmem:[#allocation5 + $0x40] sm:$0xff]
    %v57 = vld [vmem:[#allocation5 + $0x48] sm:$0xff]
    %v58 = vld [vmem:[#allocation5 + $0x50] sm:$0xff]
    %v59 = vld [vmem:[#allocation5 + $0x58] sm:$0xff]
    %v60 = vld [vmem:[#allocation5 + $0x60] sm:$0xff]
    %v61 = vld [vmem:[#allocation5 + $0x68] sm:$0xff]
    %v62 = vld [vmem:[#allocation5 + $0x70] sm:$0xff]
    %v63 = vld [vmem:[#allocation5 + $0x78] sm:$0xff]
    %v64 = vld [vmem:[%s2] sm:$0x1]
    %v66 = vlaneseq
    %v67 = vshrl.u32 %v66, 7
    %v68 = vsub.s32 0, %v67
    %v69 = vrot.slane %v64, %v68
    %71 = vmatprep.subr.mxu0 0.0
    %72 = vmatpush1.msra.mxu0 %v48
    %73 = vmatprep.subr.mxu0 0.0
    %74 = vmatpush1.msra.mxu0 %v49
    %75 = vmatprep.subr.mxu0 0.0
    %76 = vmatpush1.msra.mxu0 %v50
    %77 = vmatprep.subr.mxu0 0.0
    %78 = vmatpush1.msra.mxu0 %v51
    %79 = vmatprep.subr.mxu0 0.0
    %80 = vmatpush1.msra.mxu0 %v52
    %81 = vmatprep.subr.mxu0 0.0
    %82 = vmatpush1.msra.mxu0 %v53
    %83 = vmatprep.subr.mxu0 0.0
    %84 = vmatpush1.msra.mxu0 %v54
    %85 = vmatprep.subr.mxu0 0.0
    %86 = vmatpush1.msra.mxu0 %v55
    %87 = vmatprep.subr.mxu0 0.0
    %88 = vmatpush1.msra.mxu0 %v56
    %89 = vmatprep.subr.mxu0 0.0
    %90 = vmatpush1.msra.mxu0 %v57
    %91 = vmatprep.subr.mxu0 0.0
    %92 = vmatpush1.msra.mxu0 %v58
    %93 = vmatprep.subr.mxu0 0.0
    %94 = vmatpush1.msra.mxu0 %v59
    %95 = vmatprep.subr.mxu0 0.0
    %96 = vmatpush1.msra.mxu0 %v60
    %97 = vmatprep.subr.mxu0 0.0
    %98 = vmatpush1.msra.mxu0 %v61
    %99 = vmatprep.subr.mxu0 0.0
    %100 = vmatpush1.msra.mxu0 %v62
    %101 = vmatprep.subr.mxu0 0.0
    %102 = vmatpush1.msra.mxu0 %v63
    %103 = vmatprep.subr.mxu0 0.0
    %104 = vmatpush1.msra.mxu0 0.0
    %105 = vmatprep.subr.mxu0 0.0
    %106 = vmatpush1.msra.mxu0 0.0
    %107 = vmatprep.subr.mxu0 0.0
    %108 = vmatpush1.msra.mxu0 0.0
    %109 = vmatprep.subr.mxu0 0.0
    %110 = vmatpush1.msra.mxu0 0.0
    %111 = vmatprep.subr.mxu0 0.0
    %112 = vmatpush1.msra.mxu0 0.0
    %113 = vmatprep.subr.mxu0 0.0
    %114 = vmatpush1.msra.mxu0 0.0
    %115 = vmatprep.subr.mxu0 0.0
    %116 = vmatpush1.msra.mxu0 0.0
    %117 = vmatprep.subr.mxu0 0.0
    %118 = vmatpush1.msra.mxu0 0.0
    %119 = vmatprep.subr.mxu0 0.0
    %120 = vmatpush1.msra.mxu0 0.0
    %121 = vmatprep.subr.mxu0 0.0
    %122 = vmatpush1.msra.mxu0 0.0
    %123 = vmatprep.subr.mxu0 0.0
    %124 = vmatpush1.msra.mxu0 0.0
    %125 = vmatprep.subr.mxu0 0.0
    %126 = vmatpush1.msra.mxu0 0.0
    %127 = vmatprep.subr.mxu0 0.0
    %128 = vmatpush1.msra.mxu0 0.0
    %129 = vmatprep.subr.mxu0 0.0
    %130 = vmatpush1.msra.mxu0 0.0
    %131 = vmatprep.subr.mxu0 0.0
    %132 = vmatpush1.msra.mxu0 0.0
    %133 = vmatprep.subr.mxu0 0.0
    %134 = vmatpush1.msra.mxu0 0.0
    %135 = vmatprep.mubr.f32.mxu0 0.0
    %136 = vmatmul.mubr.f32.gmra.mrb[0].mxu0 %v47
    %v137 = vpop.f32.mrb[0].mxu0
    %v138 = vadd.f32 %v69, %v137
    %v139 = vpop.f32.mrb[0].mxu0
    %140 = vdwg.mxu0
    %v141 = vrot.slane %v138, 4
    %v142 = vadd.f32 %v138, %v141
    %v143 = vrot.slane %v142, 2
    %v144 = vadd.f32 %v142, %v143
    %v145 = vrot.slane %v144, 1
    %v146 = vadd.f32 %v144, %v145
    %v147 = vrcp.pop 8.0
    %v148 = vmul.f32 %v146, %v147
    %v149 = vsub.f32 %v138, %v148
    %v150 = vmul.f32 %v149, %v149
    %v151 = vrot.slane %v150, 4
    %v152 = vadd.f32 %v150, %v151
    %v153 = vrot.slane %v152, 2
    %v154 = vadd.f32 %v152, %v153
    %v155 = vrot.slane %v154, 1
    %v156 = vadd.f32 %v154, %v155
    %v157 = vmul.f32 %v156, %v147
    %v158 = vadd.f32 %v157, 1e-05
    %v159 = vrsqrt.pop %v158
    %v160 = vld [vmem:[%s3] sm:$0x1]
    %v161 = vmul.f32 %v159, %v160
    %v162 = vlaneseq
    %v163 = vshrl.u32 %v162, 7
    %v164 = vsub.s32 0, %v163
    %v165 = vrot.slane %v161, %v164
    %v166 = vmul.f32 %v149, %v165
    %v167 = vld [vmem:[%s4] sm:$0x1]
    %v169 = vlaneseq
    %v170 = vshrl.u32 %v169, 7
    %v171 = vsub.s32 0, %v170
    %v172 = vrot.slane %v167, %v171
    %v174 = vadd.f32 %v166, %v172
    %v175 = vmax.f32 %v174, 0.0
    %176 = vst [vmem:[#allocation7] sm:$0xff] %v175
    %177 = vst [vmem:[#allocation7 + $0x8] sm:$0xff] %v47
    // Predicated region
    $region30: #{tpu_custom_call.1} parent=1 // pred_check
      _
    $region31: #{tpu_custom_call.1} parent=1 // pred_check_branch
      %179 = sbr.rel (0) target = $region33
    $region32: #{tpu_custom_call.1} parent=1 // pred_region
      %s181 = ssub.s32 256, 256
      %182 = vsyncadd [#allocation4], %s181
      %s184 = sshll.u32 [#allocation7], 4
      %s185 = int_to_ptr.vmem [resolvable:$true] %s184
      %187 = dma.vmem_to_hbm [thread:$0]  %s185, 256, %s5, [#allocation4]
    $region33: #{tpu_custom_call.1} parent=1 // pred_fallthru
      _
    // Predicated region
    $region34: #{tpu_custom_call.1} parent=1 // pred_check
      _
    $region35: #{tpu_custom_call.1} parent=1 // pred_check_branch
      %189 = sbr.rel (0) target = $region37
    $region36: #{tpu_custom_call.1} parent=1 // pred_region
      %190 = dma.done [#allocation4], 256
    $region37: #{tpu_custom_call.1} parent=1 // pred_fallthru
      _
    %191 = vsyncpa [#allocation3], 1
    %192 = vsyncpa [#allocation6], 1
    %193 = vsyncpa [#allocation4], 1

</llo_original>
